<compile_context>
chip_gen: v6e
topology: v6e:2x2x1
jax: 0.10.0
libtpu: 0.0.40
codegen_flags: <defaults>
</compile_context>

<pallas_src>
import jax
import jax.numpy as jnp
from jax.experimental import pallas as pl
from jax.experimental.pallas import tpu as pltpu


_INV_SQRT2 = 0.7071067811865476


def _gelu_exact(x):
    # nn.GELU() default: 0.5 * x * (1 + erf(x / sqrt(2))); kept in f32.
    return 0.5 * x * (1.0 + jax.lax.erf(x * _INV_SQRT2))


def _ffn_chunk(x_ref, w1_ref, b1_ref, w2_ref):
    """f32 partial of gelu(x @ w1 + b1) @ w2 for one hidden-dim chunk."""
    xc = x_ref[...].astype(w1_ref.dtype)            # bf16 MXU when weights are bf16
    h = jnp.dot(xc, w1_ref[...], preferred_element_type=jnp.float32)
    h = h + b1_ref[...].astype(jnp.float32)
    h = _gelu_exact(h)
    # TODO(synk): tanh-approx GELU (EUP slot) is faster on v6e/v7x at small
    # d_model but deviates from nn.GELU()'s exact erf, so it stays exact here.
    return jnp.dot(h.astype(w2_ref.dtype), w2_ref[...],
                   preferred_element_type=jnp.float32)


def _mlp_resident_kernel(x_ref, w1_ref, b1_ref, w2_ref, b2_ref, o_ref):
    # Weights fully resident in VMEM; grid is over row tiles only.
    acc = _ffn_chunk(x_ref, w1_ref, b1_ref, w2_ref)
    # dropout is identity in eval mode.
    o_ref[...] = (acc + b2_ref[...].astype(jnp.float32)).astype(o_ref.dtype)


def _mlp_streamed_kernel_f32(x_ref, w1_ref, b1_ref, w2_ref, b2_ref, o_ref):
    # Hidden dim streamed; the f32 output block (resident across k via the
    # (i, 0) out index_map) doubles as the accumulator -- no scratch needed.
    k = pl.program_id(1)

    @pl.when(k == 0)
    def _init():
        o_ref[...] = jnp.broadcast_to(b2_ref[...].astype(jnp.float32), o_ref.shape)

    o_ref[...] += _ffn_chunk(x_ref, w1_ref, b1_ref, w2_ref)


def _mlp_streamed_kernel_acc(x_ref, w1_ref, b1_ref, w2_ref, b2_ref, o_ref, acc_ref):
    # Hidden dim streamed; low-precision output needs a separate f32 accumulator.
    k = pl.program_id(1)

    @pl.when(k == 0)
    def _init():
        acc_ref[...] = jnp.zeros_like(acc_ref)

    acc_ref[...] += _ffn_chunk(x_ref, w1_ref, b1_ref, w2_ref)

    @pl.when(k == pl.num_programs(1) - 1)
    def _finalize():
        # dropout is identity in eval mode.
        # TODO(synk): training-mode dropout would need pltpu.prng_seed +
        # pltpu.prng_random_bits masking here.
        o_ref[...] = (acc_ref[...] + b2_ref[...].astype(jnp.float32)).astype(o_ref.dtype)


def _round_up(n, m):
    return (n + m - 1) // m * m


def _hw_plan():
    """Generation-aware (gen tag, row tile, hidden chunk, usable VMEM budget)."""
    kind = jax.devices()[0].device_kind.lower()
    if "v5" in kind:
        return "v5", 256, 512, 100 << 20     # 128 MiB VMEM, lowest HBM BW
    if "v7" in kind:
        return "v7", 256, 256, 52 << 20      # 64 MiB physical -> leave headroom
    return "v6", 512, 512, 100 << 20         # v6e (and default)


def mlp_forward(x, w1, b1, w2, b2, *, compute_dtype=jnp.bfloat16,
                tm=None, tk=None, force_stream=False):
    """Fused MLP forward: c_proj(gelu(c_fc(x))); dropout is identity (eval).

    x : [rows, d_model]   (row-major flatten of the PyTorch [B, T, d_model])
    w1: [d_model, hidden], b1: [hidden]     (hidden = 4*d_model; weights are
    w2: [hidden, d_model], b2: [d_model]     stored pre-transposed: [in, out])

    compute_dtype: storage/MXU-operand dtype for the weight matrices.  bf16
    (default) halves weight DMA and uses the bf16-native MXU; biases, GELU and
    all accumulation stay in f32.  Pass jnp.float32 for exact-f32 matmuls.
    """
    rows, d_model = x.shape
    hidden = w1.shape[1]
    assert w1.shape == (d_model, hidden) and w2.shape == (hidden, d_model)
    assert b1.shape == (hidden,) and b2.shape == (d_model,)

    gen, tm_def, tk_def, budget = _hw_plan()
    headroom = 16 << 20

    out_dtype = x.dtype
    xb = x.dtype.itemsize
    ob = jnp.dtype(out_dtype).itemsize
    wb = jnp.dtype(compute_dtype).itemsize

    w1 = w1.astype(compute_dtype)
    w2 = w2.astype(compute_dtype)
    b1 = b1.astype(jnp.float32).reshape(1, hidden)
    b2 = b2.astype(jnp.float32).reshape(1, d_model)

    # Sublane floor depends on the activation dtype (f32: 8, bf16: 16, 8-bit: 32).
    sub = {4: 8, 2: 16, 1: 32}[xb]

    # ---- row tile ----------------------------------------------------------
    tm = tm_def if tm is None else tm
    if gen == "v7" and d_model >= 2048:
        tm = min(tm, 128)                    # keep per-step footprint inside ~52 MiB
    tm = max(sub, min(_round_up(tm, sub), _round_up(rows, sub)))
    if gen == "v7" and rows >= 2 * sub:
        # Guarantee >= 2 row tiles so the "parallel" axis feeds both TensorCores.
        tm = min(tm, max(sub, _round_up(rows, 2 * sub) // 2))

    # ---- weight-resident vs hidden-streamed --------------------------------
    def resident_fp(tm_):
        return (2 * tm_ * d_model * xb            # x tile (double-buffered)
                + 2 * d_model * hidden * wb       # w1 (budgeted double-buffered)
                + 2 * hidden * 4                  # b1
                + 2 * hidden * d_model * wb       # w2
                + 2 * d_model * 4                 # b2
                + 2 * tm_ * d_model * ob          # out tile
                + tm_ * hidden * (4 + wb))        # f32 h + low-precision copy

    can_stream = (hidden % 128) == 0
    use_resident = (not force_stream) and resident_fp(tm) + headroom <= budget
    if not use_resident and not can_stream:
        if force_stream:
            raise ValueError("hidden (=4*d_model) must be a multiple of 128 to stream")
        use_resident = True                   # last resort; may be VMEM-tight

    if not use_resident:
        def stream_fp(tk_, tm_):
            acc = 0 if out_dtype == jnp.float32 else tm_ * d_model * 4
            return (2 * tm_ * d_model * xb + 2 * d_model * tk_ * wb + 2 * tk_ * 4
                    + 2 * tk_ * d_model * wb + 2 * d_model * 4
                    + 2 * tm_ * d_model * ob + acc + tm_ * tk_ * (4 + wb))

        # hidden chunk: multiple of 128 that divides hidden and fits the budget
        tk_req = min(tk_def if tk is None else tk, hidden)
        tk_req = max(128, (tk_req // 128) * 128)
        cands = [t for t in range(tk_req, 127, -128) if hidden % t == 0]
        tk = next((t for t in cands if stream_fp(t, tm) + headroom <= budget),
                  cands[-1])
        while stream_fp(tk, tm) + headroom > budget and tm > sub:
            tm = max(sub, (tm // 2 // sub) * sub)

    # ---- pad ragged rows up to a multiple of the row tile -------------------
    rows_p = _round_up(rows, tm)
    if rows_p != rows:
        # TODO(synk): a masked ragged last tile would avoid this extra HBM copy.
        x = jnp.pad(x, ((0, rows_p - rows), (0, 0)))
    n_row_tiles = rows_p // tm

    wmat_bytes = (2 * d_model * hidden) * wb + (hidden + d_model) * 4

    if use_resident:
        cost = pl.CostEstimate(
            flops=4 * rows_p * d_model * hidden,          # two matmuls
            transcendentals=rows_p * hidden,              # erf per hidden element
            bytes_accessed=rows_p * d_model * (xb + ob) + wmat_bytes,
        )
        out = pl.pallas_call(
            _mlp_resident_kernel,
            out_shape=jax.ShapeDtypeStruct((rows_p, d_model), out_dtype),
            grid_spec=pltpu.PrefetchScalarGridSpec(
                num_scalar_prefetch=0,
                grid=(n_row_tiles,),
                in_specs=[
                    pl.BlockSpec((tm, d_model), lambda i: (i, 0)),       # x row tile
                    pl.BlockSpec((d_model, hidden), lambda i: (0, 0)),   # w1 resident
                    pl.BlockSpec((1, hidden), lambda i: (0, 0)),         # b1
                    pl.BlockSpec((hidden, d_model), lambda i: (0, 0)),   # w2 resident
                    pl.BlockSpec((1, d_model), lambda i: (0, 0)),        # b2
                ],
                out_specs=pl.BlockSpec((tm, d_model), lambda i: (i, 0)),
            ),
            compiler_params=pltpu.CompilerParams(
                dimension_semantics=("parallel",),
                vmem_limit_bytes=int(min(budget, resident_fp(tm) + headroom)),
            ),
            cost_estimate=cost,
        )(x, w1, b1, w2, b2)
        return out[:rows]

    # ---- streamed path: grid = (row tiles, hidden chunks) -------------------
    cost = pl.CostEstimate(
        flops=4 * rows_p * d_model * hidden,
        transcendentals=rows_p * hidden,
        # weights are re-streamed once per row tile in this path
        bytes_accessed=rows_p * d_model * (xb + ob) + n_row_tiles * wmat_bytes,
    )
    f32_out = out_dtype == jnp.float32
    kernel = _mlp_streamed_kernel_f32 if f32_out else _mlp_streamed_kernel_acc
    scratch = [] if f32_out else [pltpu.VMEM((tm, d_model), jnp.float32)]

    out = pl.pallas_call(
        kernel,
        out_shape=jax.ShapeDtypeStruct((rows_p, d_model), out_dtype),
        grid_spec=pltpu.PrefetchScalarGridSpec(
            num_scalar_prefetch=0,
            grid=(n_row_tiles, hidden // tk),
            in_specs=[
                pl.BlockSpec((tm, d_model), lambda i, k: (i, 0)),     # x row tile
                pl.BlockSpec((d_model, tk), lambda i, k: (0, k)),     # w1 hidden chunk
                pl.BlockSpec((1, tk), lambda i, k: (0, k)),           # b1 hidden chunk
                pl.BlockSpec((tk, d_model), lambda i, k: (k, 0)),     # w2 hidden chunk
                pl.BlockSpec((1, d_model), lambda i, k: (0, 0)),      # b2
            ],
            out_specs=pl.BlockSpec((tm, d_model), lambda i, k: (i, 0)),
            scratch_shapes=scratch,
        ),
        compiler_params=pltpu.CompilerParams(
            dimension_semantics=("parallel", "arbitrary"),
            vmem_limit_bytes=int(min(budget, stream_fp(tk, tm) + headroom)),
        ),
        cost_estimate=cost,
    )(x, w1, b1, w2, b2)
    return out[:rows]


def mlp_reference(x, w1, b1, w2, b2, compute_dtype=None):
    """Pure-JAX reference. With compute_dtype set, emulates the kernel's
    mixed-precision casts (low-precision operands, f32 accumulation)."""
    if compute_dtype is None:
        xc, w1c, w2c = x, w1, w2
        cast = lambda a: a
    else:
        xc, w1c, w2c = (a.astype(compute_dtype) for a in (x, w1, w2))
        cast = lambda a: a.astype(compute_dtype)
    h = jnp.dot(xc, w1c, preferred_element_type=jnp.float32)
    h = h + b1.reshape(1, -1).astype(jnp.float32)
    h = 0.5 * h * (1.0 + jax.lax.erf(h * _INV_SQRT2))
    out = jnp.dot(cast(h), w2c, preferred_element_type=jnp.float32)
    return out + b2.reshape(1, -1).astype(jnp.float32)


if __name__ == "__main__":
    # Small config with a lane-dense model dim: d_model=128, hidden=512,
    # batch=2, seq=8 -> rows=16.
    d_model = 128
    hidden = 4 * d_model
    batch, seq = 2, 8
    rows = batch * seq

    key = jax.random.PRNGKey(0)
    k_x, k_w1, k_b1, k_w2, k_b2 = jax.random.split(key, 5)

    x = jax.random.normal(k_x, (batch, seq, d_model), dtype=jnp.float32)

    # PyTorch-style init scale (uniform +/- 1/sqrt(fan_in)), deterministic.
    # Stored as [in_features, out_features] (transpose of torch's [out, in]).
    bound1 = 1.0 / (d_model ** 0.5)
    bound2 = 1.0 / (hidden ** 0.5)
    w1 = jax.random.uniform(k_w1, (d_model, hidden), jnp.float32, -bound1, bound1)
    b1 = jax.random.uniform(k_b1, (hidden,), jnp.float32, -bound1, bound1)
    w2 = jax.random.uniform(k_w2, (hidden, d_model), jnp.float32, -bound2, bound2)
    b2 = jax.random.uniform(k_b2, (d_model,), jnp.float32, -bound2, bound2)

    x_flat = x.reshape(rows, d_model)
    ref_f32 = mlp_reference(x_flat, w1, b1, w2, b2)
    ref_bf16 = mlp_reference(x_flat, w1, b1, w2, b2, compute_dtype=jnp.bfloat16)

    # 1) Default path: bf16 weights, weight-resident (fits VMEM at this size).
    out = mlp_forward(x_flat, w1, b1, w2, b2)
    jax.block_until_ready(out)
    assert jnp.allclose(out, ref_bf16, atol=2e-3, rtol=2e-3), "bf16 path mismatch"
    assert jnp.allclose(out, ref_f32, atol=3e-2, rtol=3e-2), "bf16 path drift vs f32 ref"

    # 2) Exact-f32 path (weights kept f32): tight match to the f32 reference.
    out_f32 = mlp_forward(x_flat, w1, b1, w2, b2, compute_dtype=jnp.float32)
    jax.block_until_ready(out_f32)
    assert jnp.allclose(out_f32, ref_f32, atol=2e-4, rtol=2e-4), "f32 path mismatch"

    # 3) Hidden-streamed path (large-d_model fallback), f32 output accumulates
    #    directly into o_ref across the k axis.
    out_stream = mlp_forward(x_flat, w1, b1, w2, b2, compute_dtype=jnp.float32,
                             force_stream=True, tk=256)
    jax.block_until_ready(out_stream)
    assert jnp.allclose(out_stream, ref_f32, atol=2e-4, rtol=2e-4), "streamed path mismatch"

    # 4) Streamed path with a bf16 output (separate f32-accumulator variant).
    out_bf16 = mlp_forward(x_flat.astype(jnp.bfloat16), w1, b1, w2, b2,
                           force_stream=True, tk=128)
    jax.block_until_ready(out_bf16)
    assert jnp.allclose(out_bf16.astype(jnp.float32), ref_bf16,
                        atol=3e-2, rtol=3e-2), "bf16-output streamed path mismatch"

    print("KERNEL_OK")
</pallas_src>

<mosaic_0001>
module attributes {stable_mosaic.version = 11 : i64} {
  func.func @_mlp_resident_kernel(%arg0: i32, %arg1: memref<16x128xf32, #tpu.memory_space<vmem>>, %arg2: memref<128x512xbf16, #tpu.memory_space<vmem>>, %arg3: memref<1x512xf32, #tpu.memory_space<vmem>>, %arg4: memref<512x128xbf16, #tpu.memory_space<vmem>>, %arg5: memref<1x128xf32, #tpu.memory_space<vmem>>, %arg6: memref<16x128xf32, #tpu.memory_space<vmem>>) attributes {dimension_semantics = [#tpu.dimension_semantics<parallel>], iteration_bounds = array<i64: 1>, scalar_prefetch = 0 : i64, scratch_operands = 0 : i64, tpu.core_type = #tpu.core_type<tc>, window_params = [{transform_indices = @transform_0, window_bounds = array<i64: 16, 128>}, {pipeline_mode = #tpu.pipeline_mode<synchronous>, transform_indices = @transform_1, window_bounds = array<i64: 128, 512>}, {pipeline_mode = #tpu.pipeline_mode<synchronous>, transform_indices = @transform_2, window_bounds = array<i64: 1, 512>}, {pipeline_mode = #tpu.pipeline_mode<synchronous>, transform_indices = @transform_3, window_bounds = array<i64: 512, 128>}, {pipeline_mode = #tpu.pipeline_mode<synchronous>, transform_indices = @transform_4, window_bounds = array<i64: 1, 128>}, {transform_indices = @transform_5, window_bounds = array<i64: 16, 128>}]} {
    %c0 = arith.constant 0 : index
    %c0_0 = arith.constant 0 : index
    %0 = vector.load %arg1[%c0, %c0_0] : memref<16x128xf32, #tpu.memory_space<vmem>>, vector<16x128xf32>
    %1 = arith.truncf %0 : vector<16x128xf32> to vector<16x128xbf16>
    %c0_1 = arith.constant 0 : index
    %c0_2 = arith.constant 0 : index
    %2 = vector.load %arg2[%c0_1, %c0_2] : memref<128x512xbf16, #tpu.memory_space<vmem>>, vector<128x512xbf16>
    %cst = arith.constant dense<0.000000e+00> : vector<16x512xf32>
    %3 = tpu.matmul %1, %2, %cst {dimension_numbers = #tpu.dot_dimension_numbers<[1], [0], [0], [1], [0, 0, 1, 1], [], []>} : vector<16x128xbf16>, vector<128x512xbf16>, vector<16x512xf32> -> vector<16x512xf32>
    %c0_3 = arith.constant 0 : index
    %c0_4 = arith.constant 0 : index
    %4 = vector.load %arg3[%c0_3, %c0_4] : memref<1x512xf32, #tpu.memory_space<vmem>>, vector<1x512xf32>
    %5 = vector.broadcast %4 : vector<1x512xf32> to vector<16x512xf32>
    %6 = arith.addf %3, %5 : vector<16x512xf32>
    %cst_5 = arith.constant 5.000000e-01 : f32
    %7 = vector.broadcast %cst_5 : f32 to vector<16x512xf32>
    %8 = arith.mulf %7, %6 : vector<16x512xf32>
    %cst_6 = arith.constant 0.707106769 : f32
    %9 = vector.broadcast %cst_6 : f32 to vector<16x512xf32>
    %10 = arith.mulf %6, %9 : vector<16x512xf32>
    %11 = math.erf %10 : vector<16x512xf32>
    %cst_7 = arith.constant 1.000000e+00 : f32
    %12 = vector.broadcast %cst_7 : f32 to vector<16x512xf32>
    %13 = arith.addf %12, %11 : vector<16x512xf32>
    %14 = arith.mulf %8, %13 : vector<16x512xf32>
    %15 = arith.truncf %14 : vector<16x512xf32> to vector<16x512xbf16>
    %c0_8 = arith.constant 0 : index
    %c0_9 = arith.constant 0 : index
    %16 = vector.load %arg4[%c0_8, %c0_9] : memref<512x128xbf16, #tpu.memory_space<vmem>>, vector<512x128xbf16>
    %cst_10 = arith.constant dense<0.000000e+00> : vector<16x128xf32>
    %17 = tpu.matmul %15, %16, %cst_10 {dimension_numbers = #tpu.dot_dimension_numbers<[1], [0], [0], [1], [0, 0, 1, 1], [], []>} : vector<16x512xbf16>, vector<512x128xbf16>, vector<16x128xf32> -> vector<16x128xf32>
    %c0_11 = arith.constant 0 : index
    %c0_12 = arith.constant 0 : index
    %18 = vector.load %arg5[%c0_11, %c0_12] : memref<1x128xf32, #tpu.memory_space<vmem>>, vector<1x128xf32>
    %19 = vector.broadcast %18 : vector<1x128xf32> to vector<16x128xf32>
    %20 = arith.addf %17, %19 : vector<16x128xf32>
    %c0_13 = arith.constant 0 : index
    %c0_14 = arith.constant 0 : index
    %21 = vector.load %arg6[%c0_13, %c0_14] : memref<16x128xf32, #tpu.memory_space<vmem>>, vector<16x128xf32>
    tpu.vector_store %arg6[%c0_13, %c0_14], %20 {strides = array<i32>} : memref<16x128xf32, #tpu.memory_space<vmem>>, vector<16x128xf32>,
    return
  }
  func.func @transform_0(%arg0: i32) -> (i32, i32) {
    %c0_i32 = arith.constant 0 : i32
    %c0_i32_0 = arith.constant 0 : i32
    return %arg0, %c0_i32 : i32, i32
  }
  func.func @transform_1(%arg0: i32) -> (i32, i32) {
    %c0_i32 = arith.constant 0 : i32
    %c0_i32_0 = arith.constant 0 : i32
    %c0_i32_1 = arith.constant 0 : i32
    return %c0_i32, %c0_i32_0 : i32, i32
  }
  func.func @transform_2(%arg0: i32) -> (i32, i32) {
    %c0_i32 = arith.constant 0 : i32
    %c0_i32_0 = arith.constant 0 : i32
    %c0_i32_1 = arith.constant 0 : i32
    return %c0_i32, %c0_i32_0 : i32, i32
  }
  func.func @transform_3(%arg0: i32) -> (i32, i32) {
    %c0_i32 = arith.constant 0 : i32
    %c0_i32_0 = arith.constant 0 : i32
    %c0_i32_1 = arith.constant 0 : i32
    return %c0_i32, %c0_i32_0 : i32, i32
  }
  func.func @transform_4(%arg0: i32) -> (i32, i32) {
    %c0_i32 = arith.constant 0 : i32
    %c0_i32_0 = arith.constant 0 : i32
    %c0_i32_1 = arith.constant 0 : i32
    return %c0_i32, %c0_i32_0 : i32, i32
  }
  func.func @transform_5(%arg0: i32) -> (i32, i32) {
    %c0_i32 = arith.constant 0 : i32
    %c0_i32_0 = arith.constant 0 : i32
    return %arg0, %c0_i32 : i32, i32
  }
}

</mosaic_0001>

<llo_original>
// kernel: tpu_custom_call.1
$region0: #{tpu_custom_call.1}
  #allocation0 [shape = 'u32[]', space=smem, size = 0x4, offset = 0x4, fixed_abs, tag = 'smem constant byte address 0x4 - core index']
  #allocation1 [shape = 'u32[144,128]{1,0:T(1,128)}', space=vmem, size = 0x12000, scoped, tag = 'internal scratch']
  %s0 = inlined_call_operand.hbm [shape: f32[16,128], index: 0, kind: input, shape index: {}]
  %s1 = inlined_call_operand.hbm [shape: bf16[128,512], index: 1, kind: input, shape index: {}]
  %s2 = inlined_call_operand.hbm [shape: f32[1,512], index: 2, kind: input, shape index: {}]
  %s3 = inlined_call_operand.hbm [shape: bf16[512,128], index: 3, kind: input, shape index: {}]
  %s4 = inlined_call_operand.vmem [shape: f32[1,128], index: 4, kind: input, shape index: {}]
  %s5 = inlined_call_operand.hbm [shape: f32[16,128], index: 5, kind: output, shape index: {}]
  %s6 = sld [smem:[#allocation0]]
  $region46: #{tpu_custom_call.1} parent=0
    _
  %s8 = ssub.s32 1, %s6
  %s9 = scalar_select 0, %s8, %s6
  $region1: #{tpu_custom_call.1} parent=0
    #allocation2 [shape = 'u8[8192]{0}', space=vmem, size = 0x2000, scoped, tag = 'input window, operand 0, single buffered']
    #allocation3 [shape = 's32[1]{0}', space=sflag, size = 0x4, scoped, tag = 'scoped memory for tpu_custom_call.1']
    #allocation4 [shape = 's32[1]{0}', space=sflag, size = 0x4, scoped, tag = 'scoped memory for tpu_custom_call.1']
    #allocation5 [shape = 'u8[131072]{0}', space=vmem, size = 0x20000, scoped, tag = 'input window, operand 1, single buffered']
    #allocation6 [shape = 's32[1]{0}', space=sflag, size = 0x4, scoped, tag = 'scoped memory for tpu_custom_call.1']
    #allocation7 [shape = 'u8[2048]{0}', space=vmem, size = 0x800, scoped, tag = 'input window, operand 2, single buffered']
    #allocation8 [shape = 'u8[131072]{0}', space=vmem, size = 0x20000, scoped, tag = 'input window, operand 3, single buffered']
    #allocation9 [shape = 's32[1]{0}', space=sflag, size = 0x4, scoped, tag = 'scoped memory for tpu_custom_call.1']
    #allocation10 [shape = 'u8[8192]{0}', space=vmem, size = 0x2000, scoped, tag = 'output window, operand 0, single buffered']
    %10 = vsyncpa [#allocation3], 0
    %11 = vsyncpa [#allocation6], 0
    %12 = vsyncpa [#allocation9], 0
    %13 = vsyncpa [#allocation4], 0
    // Predicated region
    $region2: #{tpu_custom_call.1} parent=1 // pred_check
      _
    $region3: #{tpu_custom_call.1} parent=1 // pred_check_branch
      %15 = sbr.rel (0) target = $region5
    $region4: #{tpu_custom_call.1} parent=1 // pred_region
      %s17 = ssub.s32 256, 256
      %18 = vsyncadd [#allocation3], %s17
      %s19 = sshll.u32 [#allocation2], 4
      %s20 = int_to_ptr.vmem [resolvable:$true] %s19
      %25 = dma.hbm_to_vmem [thread:$0]  %s0, 256, %s20, [#allocation3], 128, 128, 8
    $region5: #{tpu_custom_call.1} parent=1 // pred_fallthru
      _
    // Predicated region
    $region6: #{tpu_custom_call.1} parent=1 // pred_check
      _
    $region7: #{tpu_custom_call.1} parent=1 // pred_check_branch
      %27 = sbr.rel (0) target = $region9
    $region8: #{tpu_custom_call.1} parent=1 // pred_region
      %s29 = ssub.s32 4096, 4096
      %30 = vsyncadd [#allocation6], %s29
      %s31 = sshll.u32 [#allocation5], 4
      %s32 = int_to_ptr.vmem [resolvable:$true] %s31
      %37 = dma.hbm_to_vmem [thread:$0]  %s1, 4096, %s32, [#allocation6], 256, 256, 16
    $region9: #{tpu_custom_call.1} parent=1 // pred_fallthru
      _
    // Predicated region
    $region10: #{tpu_custom_call.1} parent=1 // pred_check
      _
    $region11: #{tpu_custom_call.1} parent=1 // pred_check_branch
      %39 = sbr.rel (0) target = $region13
    $region12: #{tpu_custom_call.1} parent=1 // pred_region
      %s41 = ssub.s32 64, 64
      %42 = vsyncadd [#allocation6], %s41
      %s44 = sshll.u32 [#allocation7], 4
      %s45 = int_to_ptr.vmem [resolvable:$true] %s44
      %47 = dma.hbm_to_vmem [thread:$0]  %s2, 64, %s45, [#allocation6]
    $region13: #{tpu_custom_call.1} parent=1 // pred_fallthru
      _
    // Predicated region
    $region14: #{tpu_custom_call.1} parent=1 // pred_check
      _
    $region15: #{tpu_custom_call.1} parent=1 // pred_check_branch
      %49 = sbr.rel (0) target = $region17
    $region16: #{tpu_custom_call.1} parent=1 // pred_region
      %s51 = ssub.s32 4096, 4096
      %52 = vsyncadd [#allocation9], %s51
      %s53 = sshll.u32 [#allocation8], 4
      %s54 = int_to_ptr.vmem [resolvable:$true] %s53
      %59 = dma.hbm_to_vmem [thread:$0]  %s3, 4096, %s54, [#allocation9], 64, 64, 4
    $region17: #{tpu_custom_call.1} parent=1 // pred_fallthru
      _
    // Predicated region
    $region18: #{tpu_custom_call.1} parent=1 // pred_check
      _
    $region19: #{tpu_custom_call.1} parent=1 // pred_check_branch
      %61 = sbr.rel (0) target = $region21
    $region20: #{tpu_custom_call.1} parent=1 // pred_region
      _
    $region21: #{tpu_custom_call.1} parent=1 // pred_fallthru
      _
    // Predicated region
    $region22: #{tpu_custom_call.1} parent=1 // pred_check
      _
    $region23: #{tpu_custom_call.1} parent=1 // pred_check_branch
      %63 = sbr.rel (0) target = $region25
    $region24: #{tpu_custom_call.1} parent=1 // pred_region
      %64 = dma.done [#allocation3], 256
    $region25: #{tpu_custom_call.1} parent=1 // pred_fallthru
      _
    // Predicated region
    $region26: #{tpu_custom_call.1} parent=1 // pred_check
      _
    $region27: #{tpu_custom_call.1} parent=1 // pred_check_branch
      %66 = sbr.rel (0) target = $region29
    $region28: #{tpu_custom_call.1} parent=1 // pred_region
      %67 = dma.done [#allocation6], 4096
    $region29: #{tpu_custom_call.1} parent=1 // pred_fallthru
      _
    // Predicated region
    $region30: #{tpu_custom_call.1} parent=1 // pred_check
      _
    $region31: #{tpu_custom_call.1} parent=1 // pred_check_branch
      %69 = sbr.rel (0) target = $region33
    $region32: #{tpu_custom_call.1} parent=1 // pred_region
      %70 = dma.done [#allocation6], 64
    $region33: #{tpu_custom_call.1} parent=1 // pred_fallthru
      _
    // Predicated region
    $region34: #{tpu_custom_call.1} parent=1 // pred_check
      _
    $region35: #{tpu_custom_call.1} parent=1 // pred_check_branch
      %72 = sbr.rel (0) target = $region37
    $region36: #{tpu_custom_call.1} parent=1 // pred_region
      %73 = dma.done [#allocation9], 4096
    $region37: #{tpu_custom_call.1} parent=1 // pred_fallthru
      _
    %v75 = vld [vmem:[#allocation2] sm:$0xff]
    %v76 = vld [vmem:[#allocation2 + $0x8] sm:$0xff]
    %v77 = vpack.c.bf16 %v76, %v75
    %v78 = vld [vmem:[#allocation5] sm:$0xff]
    %v79 = vld [vmem:[#allocation5 + $0x8] sm:$0xff]
    %v80 = vld [vmem:[#allocation5 + $0x10] sm:$0xff]
    %v81 = vld [vmem:[#allocation5 + $0x18] sm:$0xff]
    %v82 = vld [vmem:[#allocation5 + $0x20] sm:$0xff]
    %v83 = vld [vmem:[#allocation5 + $0x28] sm:$0xff]
    %v84 = vld [vmem:[#allocation5 + $0x30] sm:$0xff]
    %v85 = vld [vmem:[#allocation5 + $0x38] sm:$0xff]
    %v86 = vld [vmem:[#allocation5 + $0x40] sm:$0xff]
    %v87 = vld [vmem:[#allocation5 + $0x48] sm:$0xff]
    %v88 = vld [vmem:[#allocation5 + $0x50] sm:$0xff]
    %v89 = vld [vmem:[#allocation5 + $0x58] sm:$0xff]
    %v90 = vld [vmem:[#allocation5 + $0x60] sm:$0xff]
    %v91 = vld [vmem:[#allocation5 + $0x68] sm:$0xff]
    %v92 = vld [vmem:[#allocation5 + $0x70] sm:$0xff]
    %v93 = vld [vmem:[#allocation5 + $0x78] sm:$0xff]
    %v94 = vld [vmem:[#allocation5 + $0x80] sm:$0xff]
    %v95 = vld [vmem:[#allocation5 + $0x88] sm:$0xff]
    %v96 = vld [vmem:[#allocation5 + $0x90] sm:$0xff]
    %v97 = vld [vmem:[#allocation5 + $0x98] sm:$0xff]
    %v98 = vld [vmem:[#allocation5 + $0xa0] sm:$0xff]
    %v99 = vld [vmem:[#allocation5 + $0xa8] sm:$0xff]
    %v100 = vld [vmem:[#allocation5 + $0xb0] sm:$0xff]
    %v101 = vld [vmem:[#allocation5 + $0xb8] sm:$0xff]
    %v102 = vld [vmem:[#allocation5 + $0xc0] sm:$0xff]
    %v103 = vld [vmem:[#allocation5 + $0xc8] sm:$0xff]
    %v104 = vld [vmem:[#allocation5 + $0xd0] sm:$0xff]
    %v105 = vld [vmem:[#allocation5 + $0xd8] sm:$0xff]
    %v106 = vld [vmem:[#allocation5 + $0xe0] sm:$0xff]
    %v107 = vld [vmem:[#allocation5 + $0xe8] sm:$0xff]
    %v108 = vld [vmem:[#allocation5 + $0xf0] sm:$0xff]
    %v109 = vld [vmem:[#allocation5 + $0xf8] sm:$0xff]
    %v110 = vld [vmem:[#allocation7] sm:$0xf]
    %v112 = vlaneseq
    %v113 = vshrl.u32 %v112, 7
    %v114 = vsub.s32 0, %v113
    %v115 = vrot.slane %v110, %v114
    %v116 = vlaneseq
    %v117 = vshrl.u32 %v116, 7
    %v118 = vsub.s32 1, %v117
    %v119 = vrot.slane %v110, %v118
    %v120 = vlaneseq
    %v121 = vshrl.u32 %v120, 7
    %v122 = vsub.s32 2, %v121
    %v123 = vrot.slane %v110, %v122
    %v124 = vlaneseq
    %v125 = vshrl.u32 %v124, 7
    %v126 = vsub.s32 3, %v125
    %v127 = vrot.slane %v110, %v126
    %v164 = vunpack.c.l.b16 %v78
    %v165 = vunpack.c.h.b16 %v78
    %v166 = vunpack.c.l.b16 %v79
    %v167 = vunpack.c.h.b16 %v79
    %v168 = vunpack.c.l.b16 %v80
    %v169 = vunpack.c.h.b16 %v80
    %v170 = vunpack.c.l.b16 %v81
    %v171 = vunpack.c.h.b16 %v81
    %v172 = vunpack.c.l.b16 %v82
    %v173 = vunpack.c.h.b16 %v82
    %v174 = vunpack.c.l.b16 %v83
    %v175 = vunpack.c.h.b16 %v83
    %v176 = vunpack.c.l.b16 %v84
    %v177 = vunpack.c.h.b16 %v84
    %v178 = vunpack.c.l.b16 %v85
    %v179 = vunpack.c.h.b16 %v85
    %v180 = vunpack.c.l.b16 %v86
    %v181 = vunpack.c.h.b16 %v86
    %v182 = vunpack.c.l.b16 %v87
    %v183 = vunpack.c.h.b16 %v87
    %v184 = vunpack.c.l.b16 %v88
    %v185 = vunpack.c.h.b16 %v88
    %v186 = vunpack.c.l.b16 %v89
    %v187 = vunpack.c.h.b16 %v89
    %v188 = vunpack.c.l.b16 %v90
    %v189 = vunpack.c.h.b16 %v90
    %v190 = vunpack.c.l.b16 %v91
    %v191 = vunpack.c.h.b16 %v91
    %v192 = vunpack.c.l.b16 %v92
    %v193 = vunpack.c.h.b16 %v92
    %v194 = vunpack.c.l.b16 %v93
    %v195 = vunpack.c.h.b16 %v93
    %v196 = vunpack.c.l.b16 %v94
    %v197 = vunpack.c.h.b16 %v94
    %v198 = vunpack.c.l.b16 %v95
    %v199 = vunpack.c.h.b16 %v95
    %v200 = vunpack.c.l.b16 %v96
    %v201 = vunpack.c.h.b16 %v96
    %v202 = vunpack.c.l.b16 %v97
    %v203 = vunpack.c.h.b16 %v97
    %v204 = vunpack.c.l.b16 %v98
    %v205 = vunpack.c.h.b16 %v98
    %v206 = vunpack.c.l.b16 %v99
    %v207 = vunpack.c.h.b16 %v99
    %v208 = vunpack.c.l.b16 %v100
    %v209 = vunpack.c.h.b16 %v100
    %v210 = vunpack.c.l.b16 %v101
    %v211 = vunpack.c.h.b16 %v101
    %v212 = vunpack.c.l.b16 %v102
    %v213 = vunpack.c.h.b16 %v102
    %v214 = vunpack.c.l.b16 %v103
    %v215 = vunpack.c.h.b16 %v103
    %v216 = vunpack.c.l.b16 %v104
    %v217 = vunpack.c.h.b16 %v104
    %v218 = vunpack.c.l.b16 %v105
    %v219 = vunpack.c.h.b16 %v105
    %v220 = vunpack.c.l.b16 %v106
    %v221 = vunpack.c.h.b16 %v106
    %v222 = vunpack.c.l.b16 %v107
    %v223 = vunpack.c.h.b16 %v107
    %v224 = vunpack.c.l.b16 %v108
    %v225 = vunpack.c.h.b16 %v108
    %v226 = vunpack.c.l.b16 %v109
    %v227 = vunpack.c.h.b16 %v109
    %v228 = vpack.c.b16 %v168, %v164
    %v229 = vpack.c.b16 %v169, %v165
    %v230 = vpack.c.b16 %v170, %v166
    %v231 = vpack.c.b16 %v171, %v167
    %v232 = vpack.c.b16 %v176, %v172
    %v233 = vpack.c.b16 %v177, %v173
    %v234 = vpack.c.b16 %v178, %v174
    %v235 = vpack.c.b16 %v179, %v175
    %v236 = vpack.c.b16 %v184, %v180
    %v237 = vpack.c.b16 %v185, %v181
    %v238 = vpack.c.b16 %v186, %v182
    %v239 = vpack.c.b16 %v187, %v183
    %v240 = vpack.c.b16 %v192, %v188
    %v241 = vpack.c.b16 %v193, %v189
    %v242 = vpack.c.b16 %v194, %v190
    %v243 = vpack.c.b16 %v195, %v191
    %v244 = vpack.c.b16 %v200, %v196
    %v245 = vpack.c.b16 %v201, %v197
    %v246 = vpack.c.b16 %v202, %v198
    %v247 = vpack.c.b16 %v203, %v199
    %v248 = vpack.c.b16 %v208, %v204
    %v249 = vpack.c.b16 %v209, %v205
    %v250 = vpack.c.b16 %v210, %v206
    %v251 = vpack.c.b16 %v211, %v207
    %v252 = vpack.c.b16 %v216, %v212
    %v253 = vpack.c.b16 %v217, %v213
    %v254 = vpack.c.b16 %v218, %v214
    %v255 = vpack.c.b16 %v219, %v215
    %v256 = vpack.c.b16 %v224, %v220
    %v257 = vpack.c.b16 %v225, %v221
    %v258 = vpack.c.b16 %v226, %v222
    %v259 = vpack.c.b16 %v227, %v223
    %292 = vmatprep.subr.bf16.mxu0 %v257
    %293 = vmatpush1.bf16.msra.mxu0 %v256
    %294 = vmatprep.subr.bf16.mxu0 %v253
    %295 = vmatpush1.bf16.msra.mxu0 %v252
    %296 = vmatprep.subr.bf16.mxu0 %v249
    %297 = vmatpush1.bf16.msra.mxu0 %v248
    %298 = vmatprep.subr.bf16.mxu0 %v245
    %299 = vmatpush1.bf16.msra.mxu0 %v244
    %300 = vmatprep.subr.bf16.mxu0 %v241
    %301 = vmatpush1.bf16.msra.mxu0 %v240
    %302 = vmatprep.subr.bf16.mxu0 %v237
    %303 = vmatpush1.bf16.msra.mxu0 %v236
    %304 = vmatprep.subr.bf16.mxu0 %v233
    %305 = vmatpush1.bf16.msra.mxu0 %v232
    %306 = vmatprep.subr.bf16.mxu0 %v229
    %307 = vmatpush1.bf16.msra.mxu0 %v228
    %308 = vmatprep.subr.bf16.mxu0 0
    %309 = vmatpush2.bf16.msra.mxu0 0
    %310 = vmatprep.subr.bf16.mxu0 0
    %311 = vmatpush2.bf16.msra.mxu0 0
    %312 = vmatprep.subr.bf16.mxu0 0
    %313 = vmatpush2.bf16.msra.mxu0 0
    %314 = vmatprep.subr.bf16.mxu0 0
    %315 = vmatpush2.bf16.msra.mxu0 0
    %316 = vmatprep.subr.bf16.mxu0 0
    %317 = vmatpush2.bf16.msra.mxu0 0
    %318 = vmatprep.subr.bf16.mxu0 0
    %319 = vmatpush2.bf16.msra.mxu0 0
    %320 = vmatprep.subr.bf16.mxu0 0
    %321 = vmatpush2.bf16.msra.mxu0 0
    %322 = vmatprep.subr.bf16.mxu0 0
    %323 = vmatpush2.bf16.msra.mxu0 0
    %324 = vmatprep.mubr.bf16.mxu0 0
    %325 = vmatmul.mubr.bf16.gmra.mxu0 %v77
    %v326 = vpop.f32.mrf.mxu0
    %v327 = vadd.f32 %v115, %v326
    %v328 = vpop.f32.mrf.mxu0
    %v329 = vadd.f32 %v119, %v328
    %v330 = vpop.f32.mrf.mxu0
    %v331 = vadd.f32 %v115, %v330
    %v332 = vpop.f32.mrf.mxu0
    %v333 = vadd.f32 %v119, %v332
    %334 = vdwg.mxu0
    %335 = vmatprep.subr.bf16.mxu0 %v259
    %336 = vmatpush1.bf16.msra.mxu0 %v258
    %337 = vmatprep.subr.bf16.mxu0 %v255
    %338 = vmatpush1.bf16.msra.mxu0 %v254
    %339 = vmatprep.subr.bf16.mxu0 %v251
    %340 = vmatpush1.bf16.msra.mxu0 %v250
    %341 = vmatprep.subr.bf16.mxu0 %v247
    %342 = vmatpush1.bf16.msra.mxu0 %v246
    %343 = vmatprep.subr.bf16.mxu0 %v243
    %344 = vmatpush1.bf16.msra.mxu0 %v242
    %345 = vmatprep.subr.bf16.mxu0 %v239
    %346 = vmatpush1.bf16.msra.mxu0 %v238
    %347 = vmatprep.subr.bf16.mxu0 %v235
    %348 = vmatpush1.bf16.msra.mxu0 %v234
    %349 = vmatprep.subr.bf16.mxu0 %v231
    %350 = vmatpush1.bf16.msra.mxu0 %v230
    %351 = vmatprep.subr.bf16.mxu0 0
    %352 = vmatpush2.bf16.msra.mxu0 0
    %353 = vmatprep.subr.bf16.mxu0 0
    %354 = vmatpush2.bf16.msra.mxu0 0
    %355 = vmatprep.subr.bf16.mxu0 0
    %356 = vmatpush2.bf16.msra.mxu0 0
    %357 = vmatprep.subr.bf16.mxu0 0
    %358 = vmatpush2.bf16.msra.mxu0 0
    %359 = vmatprep.subr.bf16.mxu0 0
    %360 = vmatpush2.bf16.msra.mxu0 0
    %361 = vmatprep.subr.bf16.mxu0 0
    %362 = vmatpush2.bf16.msra.mxu0 0
    %363 = vmatprep.subr.bf16.mxu0 0
    %364 = vmatpush2.bf16.msra.mxu0 0
    %365 = vmatprep.subr.bf16.mxu0 0
    %366 = vmatpush2.bf16.msra.mxu0 0
    %367 = vmatprep.mubr.bf16.mxu0 0
    %368 = vmatmul.mubr.bf16.gmra.mxu0 %v77
    %v369 = vpop.f32.mrf.mxu0
    %v370 = vadd.f32 %v123, %v369
    %v371 = vpop.f32.mrf.mxu0
    %v372 = vadd.f32 %v127, %v371
    %v373 = vpop.f32.mrf.mxu0
    %v374 = vadd.f32 %v123, %v373
    %v375 = vpop.f32.mrf.mxu0
    %v376 = vadd.f32 %v127, %v375
    %377 = vdwg.mxu0
    %v378 = vmul.f32 %v327, 0.5
    %v379 = vmul.f32 %v329, 0.5
    %v380 = vmul.f32 %v370, 0.5
    %v381 = vmul.f32 %v372, 0.5
    %v382 = vmul.f32 %v331, 0.5
    %v383 = vmul.f32 %v333, 0.5
    %v384 = vmul.f32 %v374, 0.5
    %v385 = vmul.f32 %v376, 0.5
    %v386 = vmul.f32 %v327, 0.70710677
    %v387 = vmul.f32 %v329, 0.70710677
    %v388 = vmul.f32 %v370, 0.70710677
    %v389 = vmul.f32 %v372, 0.70710677
    %v390 = vmul.f32 %v331, 0.70710677
    %v391 = vmul.f32 %v333, 0.70710677
    %v392 = vmul.f32 %v374, 0.70710677
    %v393 = vmul.f32 %v376, 0.70710677
    %v394 = verf.f32.pop %v386
    %v395 = verf.f32.pop %v387
    %v396 = verf.f32.pop %v388
    %v397 = verf.f32.pop %v389
    %v398 = verf.f32.pop %v390
    %v399 = verf.f32.pop %v391
    %v400 = verf.f32.pop %v392
    %v401 = verf.f32.pop %v393
    %v402 = vadd.f32 %v394, 1.0
    %v403 = vadd.f32 %v395, 1.0
    %v404 = vadd.f32 %v396, 1.0
    %v405 = vadd.f32 %v397, 1.0
    %v406 = vadd.f32 %v398, 1.0
    %v407 = vadd.f32 %v399, 1.0
    %v408 = vadd.f32 %v400, 1.0
    %v409 = vadd.f32 %v401, 1.0
    %v410 = vmul.f32 %v378, %v402
    %v411 = vmul.f32 %v379, %v403
    %v412 = vmul.f32 %v380, %v404
    %v413 = vmul.f32 %v381, %v405
    %v414 = vmul.f32 %v382, %v406
    %v415 = vmul.f32 %v383, %v407
    %v416 = vmul.f32 %v384, %v408
    %v417 = vmul.f32 %v385, %v409
    %v418 = vpack.c.bf16 %v414, %v410
    %v419 = vpack.c.bf16 %v415, %v411
    %v420 = vpack.c.bf16 %v416, %v412
    %v421 = vpack.c.bf16 %v417, %v413
    %v422 = vld [vmem:[#allocation8] sm:$0xf]
    %v423 = vld [vmem:[#allocation8 + $0x4] sm:$0xf]
    %v424 = vld [vmem:[#allocation8 + $0x8] sm:$0xf]
    %v425 = vld [vmem:[#allocation8 + $0xc] sm:$0xf]
    %v426 = vld [vmem:[#allocation8 + $0x10] sm:$0xf]
    %v427 = vld [vmem:[#allocation8 + $0x14] sm:$0xf]
    %v428 = vld [vmem:[#allocation8 + $0x18] sm:$0xf]
    %v429 = vld [vmem:[#allocation8 + $0x1c] sm:$0xf]
    %v430 = vld [vmem:[#allocation8 + $0x20] sm:$0xf]
    %v431 = vld [vmem:[#allocation8 + $0x24] sm:$0xf]
    %v432 = vld [vmem:[#allocation8 + $0x28] sm:$0xf]
    %v433 = vld [vmem:[#allocation8 + $0x2c] sm:$0xf]
    %v434 = vld [vmem:[#allocation8 + $0x30] sm:$0xf]
    %v435 = vld [vmem:[#allocation8 + $0x34] sm:$0xf]
    %v436 = vld [vmem:[#allocation8 + $0x38] sm:$0xf]
    %v437 = vld [vmem:[#allocation8 + $0x3c] sm:$0xf]
    %v438 = vld [vmem:[#allocation8 + $0x40] sm:$0xf]
    %v439 = vld [vmem:[#allocation8 + $0x44] sm:$0xf]
    %v440 = vld [vmem:[#allocation8 + $0x48] sm:$0xf]
    %v441 = vld [vmem:[#allocation8 + $0x4c] sm:$0xf]
    %v442 = vld [vmem:[#allocation8 + $0x50] sm:$0xf]
    %v443 = vld [vmem:[#allocation8 + $0x54] sm:$0xf]
    %v444 = vld [vmem:[#allocation8 + $0x58] sm:$0xf]
    %v445 = vld [vmem:[#allocation8 + $0x5c] sm:$0xf]
    %v446 = vld [vmem:[#allocation8 + $0x60] sm:$0xf]
    %v447 = vld [vmem:[#allocation8 + $0x64] sm:$0xf]
    %v448 = vld [vmem:[#allocation8 + $0x68] sm:$0xf]
    %v449 = vld [vmem:[#allocation8 + $0x6c] sm:$0xf]
    %v450 = vld [vmem:[#allocation8 + $0x70] sm:$0xf]
    %v451 = vld [vmem:[#allocation8 + $0x74] sm:$0xf]
    %v452 = vld [vmem:[#allocation8 + $0x78] sm:$0xf]
    %v453 = vld [vmem:[#allocation8 + $0x7c] sm:$0xf]
    %v454 = vld [vmem:[#allocation8 + $0x80] sm:$0xf]
    %v455 = vld [vmem:[#allocation8 + $0x84] sm:$0xf]
    %v456 = vld [vmem:[#allocation8 + $0x88] sm:$0xf]
    %v457 = vld [vmem:[#allocation8 + $0x8c] sm:$0xf]
    %v458 = vld [vmem:[#allocation8 + $0x90] sm:$0xf]
    %v459 = vld [vmem:[#allocation8 + $0x94] sm:$0xf]
    %v460 = vld [vmem:[#allocation8 + $0x98] sm:$0xf]
    %v461 = vld [vmem:[#allocation8 + $0x9c] sm:$0xf]
    %v462 = vld [vmem:[#allocation8 + $0xa0] sm:$0xf]
    %v463 = vld [vmem:[#allocation8 + $0xa4] sm:$0xf]
    %v464 = vld [vmem:[#allocation8 + $0xa8] sm:$0xf]
    %v465 = vld [vmem:[#allocation8 + $0xac] sm:$0xf]
    %v466 = vld [vmem:[#allocation8 + $0xb0] sm:$0xf]
    %v467 = vld [vmem:[#allocation8 + $0xb4] sm:$0xf]
    %v468 = vld [vmem:[#allocation8 + $0xb8] sm:$0xf]
    %v469 = vld [vmem:[#allocation8 + $0xbc] sm:$0xf]
    %v470 = vld [vmem:[#allocation8 + $0xc0] sm:$0xf]
    %v471 = vld [vmem:[#allocation8 + $0xc4] sm:$0xf]
    %v472 = vld [vmem:[#allocation8 + $0xc8] sm:$0xf]
    %v473 = vld [vmem:[#allocation8 + $0xcc] sm:$0xf]
    %v474 = vld [vmem:[#allocation8 + $0xd0] sm:$0xf]
    %v475 = vld [vmem:[#allocation8 + $0xd4] sm:$0xf]
    %v476 = vld [vmem:[#allocation8 + $0xd8] sm:$0xf]
    %v477 = vld [vmem:[#allocation8 + $0xdc] sm:$0xf]
    %v478 = vld [vmem:[#allocation8 + $0xe0] sm:$0xf]
    %v479 = vld [vmem:[#allocation8 + $0xe4] sm:$0xf]
    %v480 = vld [vmem:[#allocation8 + $0xe8] sm:$0xf]
    %v481 = vld [vmem:[#allocation8 + $0xec] sm:$0xf]
    %v482 = vld [vmem:[#allocation8 + $0xf0] sm:$0xf]
    %v483 = vld [vmem:[#allocation8 + $0xf4] sm:$0xf]
    %v484 = vld [vmem:[#allocation8 + $0xf8] sm:$0xf]
    %v485 = vld [vmem:[#allocation8 + $0xfc] sm:$0xf]
    %v486 = vld [vmem:[%s4] sm:$0x1]
    %v488 = vlaneseq
    %v489 = vshrl.u32 %v488, 7
    %v490 = vsub.s32 0, %v489
    %v491 = vrot.slane %v486, %v490
    %v557 = vunpack.c.l.b16 %v422
    %v558 = vunpack.c.l.b16 %v423
    %v559 = vunpack.c.l.b16 %v424
    %v560 = vunpack.c.l.b16 %v425
    %v561 = vunpack.c.l.b16 %v426
    %v562 = vunpack.c.l.b16 %v427
    %v563 = vunpack.c.l.b16 %v428
    %v564 = vunpack.c.l.b16 %v429
    %v565 = vunpack.c.l.b16 %v430
    %v566 = vunpack.c.l.b16 %v431
    %v567 = vunpack.c.l.b16 %v432
    %v568 = vunpack.c.l.b16 %v433
    %v569 = vunpack.c.l.b16 %v434
    %v570 = vunpack.c.l.b16 %v435
    %v571 = vunpack.c.l.b16 %v436
    %v572 = vunpack.c.l.b16 %v437
    %v573 = vunpack.c.l.b16 %v438
    %v574 = vunpack.c.l.b16 %v439
    %v575 = vunpack.c.l.b16 %v440
    %v576 = vunpack.c.l.b16 %v441
    %v577 = vunpack.c.l.b16 %v442
    %v578 = vunpack.c.l.b16 %v443
    %v579 = vunpack.c.l.b16 %v444
    %v580 = vunpack.c.l.b16 %v445
    %v581 = vunpack.c.l.b16 %v446
    %v582 = vunpack.c.l.b16 %v447
    %v583 = vunpack.c.l.b16 %v448
    %v584 = vunpack.c.l.b16 %v449
    %v585 = vunpack.c.l.b16 %v450
    %v586 = vunpack.c.l.b16 %v451
    %v587 = vunpack.c.l.b16 %v452
    %v588 = vunpack.c.l.b16 %v453
    %v589 = vunpack.c.l.b16 %v454
    %v590 = vunpack.c.l.b16 %v455
    %v591 = vunpack.c.l.b16 %v456
    %v592 = vunpack.c.l.b16 %v457
    %v593 = vunpack.c.l.b16 %v458
    %v594 = vunpack.c.l.b16 %v459
    %v595 = vunpack.c.l.b16 %v460
    %v596 = vunpack.c.l.b16 %v461
    %v597 = vunpack.c.l.b16 %v462
    %v598 = vunpack.c.l.b16 %v463
    %v599 = vunpack.c.l.b16 %v464
    %v600 = vunpack.c.l.b16 %v465
    %v601 = vunpack.c.l.b16 %v466
    %v602 = vunpack.c.l.b16 %v467
    %v603 = vunpack.c.l.b16 %v468
    %v604 = vunpack.c.l.b16 %v469
    %v605 = vunpack.c.l.b16 %v470
    %v606 = vunpack.c.l.b16 %v471
    %v607 = vunpack.c.l.b16 %v472
    %v608 = vunpack.c.l.b16 %v473
    %v609 = vunpack.c.l.b16 %v474
    %v610 = vunpack.c.l.b16 %v475
    %v611 = vunpack.c.l.b16 %v476
    %v612 = vunpack.c.l.b16 %v477
    %v613 = vunpack.c.l.b16 %v478
    %v614 = vunpack.c.l.b16 %v479
    %v615 = vunpack.c.l.b16 %v480
    %v616 = vunpack.c.l.b16 %v481
    %v617 = vunpack.c.l.b16 %v482
    %v618 = vunpack.c.l.b16 %v483
    %v619 = vunpack.c.l.b16 %v484
    %v620 = vunpack.c.l.b16 %v485
    %v621 = vpack.c.b16 %v558, %v557
    %v622 = vpack.c.b16 %v560, %v559
    %v623 = vpack.c.b16 %v562, %v561
    %v624 = vpack.c.b16 %v564, %v563
    %v625 = vpack.c.b16 %v566, %v565
    %v626 = vpack.c.b16 %v568, %v567
    %v627 = vpack.c.b16 %v570, %v569
    %v628 = vpack.c.b16 %v572, %v571
    %v629 = vpack.c.b16 %v574, %v573
    %v630 = vpack.c.b16 %v576, %v575
    %v631 = vpack.c.b16 %v578, %v577
    %v632 = vpack.c.b16 %v580, %v579
    %v633 = vpack.c.b16 %v582, %v581
    %v634 = vpack.c.b16 %v584, %v583
    %v635 = vpack.c.b16 %v586, %v585
    %v636 = vpack.c.b16 %v588, %v587
    %v637 = vpack.c.b16 %v590, %v589
    %v638 = vpack.c.b16 %v592, %v591
    %v639 = vpack.c.b16 %v594, %v593
    %v640 = vpack.c.b16 %v596, %v595
    %v641 = vpack.c.b16 %v598, %v597
    %v642 = vpack.c.b16 %v600, %v599
    %v643 = vpack.c.b16 %v602, %v601
    %v644 = vpack.c.b16 %v604, %v603
    %v645 = vpack.c.b16 %v606, %v605
    %v646 = vpack.c.b16 %v608, %v607
    %v647 = vpack.c.b16 %v610, %v609
    %v648 = vpack.c.b16 %v612, %v611
    %v649 = vpack.c.b16 %v614, %v613
    %v650 = vpack.c.b16 %v616, %v615
    %v651 = vpack.c.b16 %v618, %v617
    %v652 = vpack.c.b16 %v620, %v619
    %685 = vmatprep.subr.bf16.mxu0 0
    %686 = vmatpush1.bf16.msra.mxu0 %v628
    %687 = vmatprep.subr.bf16.mxu0 0
    %688 = vmatpush1.bf16.msra.mxu0 %v627
    %689 = vmatprep.subr.bf16.mxu0 0
    %690 = vmatpush1.bf16.msra.mxu0 %v626
    %691 = vmatprep.subr.bf16.mxu0 0
    %692 = vmatpush1.bf16.msra.mxu0 %v625
    %693 = vmatprep.subr.bf16.mxu0 0
    %694 = vmatpush1.bf16.msra.mxu0 %v624
    %695 = vmatprep.subr.bf16.mxu0 0
    %696 = vmatpush1.bf16.msra.mxu0 %v623
    %697 = vmatprep.subr.bf16.mxu0 0
    %698 = vmatpush1.bf16.msra.mxu0 %v622
    %699 = vmatprep.subr.bf16.mxu0 0
    %700 = vmatpush1.bf16.msra.mxu0 %v621
    %701 = vmatprep.subr.bf16.mxu0 0
    %702 = vmatpush2.bf16.msra.mxu0 %v636
    %703 = vmatprep.subr.bf16.mxu0 0
    %704 = vmatpush2.bf16.msra.mxu0 %v635
    %705 = vmatprep.subr.bf16.mxu0 0
    %706 = vmatpush2.bf16.msra.mxu0 %v634
    %707 = vmatprep.subr.bf16.mxu0 0
    %708 = vmatpush2.bf16.msra.mxu0 %v633
    %709 = vmatprep.subr.bf16.mxu0 0
    %710 = vmatpush2.bf16.msra.mxu0 %v632
    %711 = vmatprep.subr.bf16.mxu0 0
    %712 = vmatpush2.bf16.msra.mxu0 %v631
    %713 = vmatprep.subr.bf16.mxu0 0
    %714 = vmatpush2.bf16.msra.mxu0 %v630
    %715 = vmatprep.subr.bf16.mxu0 0
    %716 = vmatpush2.bf16.msra.mxu0 %v629
    %717 = vmatprep.mubr.bf16.mxu0 %v419
    %718 = vmatmul.mubr.bf16.gmra.mxu0 %v418
    %v719 = vpop.f32.mrf.mxu0
    %v720 = vadd.f32 %v491, %v719
    %v721 = vpop.f32.mrf.mxu0
    %v722 = vpop.f32.mrf.mxu0
    %v723 = vadd.f32 %v491, %v722
    %v724 = vpop.f32.mrf.mxu0
    %725 = vdwg.mxu0
    %726 = vmatprep.subr.bf16.mxu0 0
    %727 = vmatpush1.bf16.msra.mxu0 %v644
    %728 = vmatprep.subr.bf16.mxu0 0
    %729 = vmatpush1.bf16.msra.mxu0 %v643
    %730 = vmatprep.subr.bf16.mxu0 0
    %731 = vmatpush1.bf16.msra.mxu0 %v642
    %732 = vmatprep.subr.bf16.mxu0 0
    %733 = vmatpush1.bf16.msra.mxu0 %v641
    %734 = vmatprep.subr.bf16.mxu0 0
    %735 = vmatpush1.bf16.msra.mxu0 %v640
    %736 = vmatprep.subr.bf16.mxu0 0
    %737 = vmatpush1.bf16.msra.mxu0 %v639
    %738 = vmatprep.subr.bf16.mxu0 0
    %739 = vmatpush1.bf16.msra.mxu0 %v638
    %740 = vmatprep.subr.bf16.mxu0 0
    %741 = vmatpush1.bf16.msra.mxu0 %v637
    %742 = vmatprep.subr.bf16.mxu0 0
    %743 = vmatpush2.bf16.msra.mxu0 %v652
    %744 = vmatprep.subr.bf16.mxu0 0
    %745 = vmatpush2.bf16.msra.mxu0 %v651
    %746 = vmatprep.subr.bf16.mxu0 0
    %747 = vmatpush2.bf16.msra.mxu0 %v650
    %748 = vmatprep.subr.bf16.mxu0 0
    %749 = vmatpush2.bf16.msra.mxu0 %v649
    %750 = vmatprep.subr.bf16.mxu0 0
    %751 = vmatpush2.bf16.msra.mxu0 %v648
    %752 = vmatprep.subr.bf16.mxu0 0
    %753 = vmatpush2.bf16.msra.mxu0 %v647
    %754 = vmatprep.subr.bf16.mxu0 0
    %755 = vmatpush2.bf16.msra.mxu0 %v646
    %756 = vmatprep.subr.bf16.mxu0 0
    %757 = vmatpush2.bf16.msra.mxu0 %v645
    %758 = vmatprep.mubr.bf16.mxu0 %v421
    %759 = vmatmul.mubr.bf16.gmra.mxu0 %v420
    %v760 = vpop.f32.mrf.mxu0
    %v761 = vadd.f32 %v720, %v760
    %v762 = vpop.f32.mrf.mxu0
    %v763 = vpop.f32.mrf.mxu0
    %v764 = vadd.f32 %v723, %v763
    %v765 = vpop.f32.mrf.mxu0
    %766 = vdwg.mxu0
    %767 = vst [vmem:[#allocation10] sm:$0xff] %v761
    %768 = vst [vmem:[#allocation10 + $0x8] sm:$0xff] %v764
    // Predicated region
    $region38: #{tpu_custom_call.1} parent=1 // pred_check
      _
    $region39: #{tpu_custom_call.1} parent=1 // pred_check_branch
      %770 = sbr.rel (0) target = $region41
    $region40: #{tpu_custom_call.1} parent=1 // pred_region
      %s772 = ssub.s32 256, 256
      %773 = vsyncadd [#allocation4], %s772
      %s774 = sshll.u32 [#allocation10], 4
      %s775 = int_to_ptr.vmem [resolvable:$true] %s774
      %780 = dma.vmem_to_hbm [thread:$0]  %s775, 256, %s5, [#allocation4], 128, 128, 8
    $region41: #{tpu_custom_call.1} parent=1 // pred_fallthru
      _
    // Predicated region
    $region42: #{tpu_custom_call.1} parent=1 // pred_check
      _
    $region43: #{tpu_custom_call.1} parent=1 // pred_check_branch
      %782 = sbr.rel (0) target = $region45
    $region44: #{tpu_custom_call.1} parent=1 // pred_region
      %783 = dma.done [#allocation4], 256
    $region45: #{tpu_custom_call.1} parent=1 // pred_fallthru
      _
    %784 = vsyncpa [#allocation3], 1
    %785 = vsyncpa [#allocation6], 1
    %786 = vsyncpa [#allocation9], 1
    %787 = vsyncpa [#allocation4], 1

</llo_original>
